<compile_context>
chip_gen: v6e
topology: v6e:2x2x1
jax: 0.10.0
libtpu: 0.0.40
codegen_flags: <defaults>
</compile_context>

<pallas_src>
import jax
import jax.numpy as jnp
from jax.experimental import pallas as pl
from jax.experimental.pallas import tpu as pltpu


def gcn_kernel(a_ref, x_ref, w1_ref, b1_ref, w2_ref, b2_ref, out_ref):
    """Fused 2-layer GCN: out = A @ (relu((A @ X) @ W1 + b1) @ W2) + b2."""
    a = a_ref[...]                                   # normalized adjacency (N, N)

    # ---- layer 1 (in < hid): aggregate at the narrow width, then transform --
    ax = jnp.dot(a, x_ref[...], preferred_element_type=jnp.float32)      # (N, in)
    h = jnp.dot(ax, w1_ref[...], preferred_element_type=jnp.float32)     # (N, hid)
    h = jnp.maximum(h + b1_ref[...], 0.0)            # bias + torch.relu (VPU)

    # ---- layer 2 (hid > out): transform first, aggregate at the narrow width
    hw = jnp.dot(h, w2_ref[...], preferred_element_type=jnp.float32)     # (N, out)
    out_ref[...] = (
        jnp.dot(a, hw, preferred_element_type=jnp.float32) + b2_ref[...]
    )


def gcnn_forward(a_norm, x, w1, b1, w2, b2):
    """Pallas wrapper: one grid step, all operands resident in VMEM."""
    n = x.shape[0]
    out_dim = w2.shape[1]
    inputs = [a_norm, x, w1, b1, w2, b2]

    def full_spec(arr):
        shp = arr.shape
        return pl.BlockSpec(shp, lambda *_: (0,) * len(shp))

    return pl.pallas_call(
        gcn_kernel,
        out_shape=jax.ShapeDtypeStruct((n, out_dim), jnp.float32),
        grid=(1,),
        in_specs=[full_spec(arr) for arr in inputs],
        out_specs=pl.BlockSpec((n, out_dim), lambda i: (0, 0)),
        compiler_params=pltpu.CompilerParams(dimension_semantics=("arbitrary",)),
    )(*inputs)


def normalized_adjacency(n, edges):
    """A_norm = D_in^{-1/2} (A + I) D_out^{-1/2}  (dgl.add_self_loop + norm='both')."""
    src = jnp.array([s for s, _ in edges], jnp.int32)
    dst = jnp.array([d for _, d in edges], jnp.int32)
    a = jnp.zeros((n, n), jnp.float32)
    a = a.at[dst, src].set(1.0)             # A[i, j] = 1  <=>  edge j -> i
    a = a + jnp.eye(n, dtype=jnp.float32)   # dgl.add_self_loop
    d_in = jnp.sum(a, axis=1)               # destination degrees (rows)
    d_out = jnp.sum(a, axis=0)              # source degrees (cols)
    return a * (d_in ** -0.5)[:, None] * (d_out ** -0.5)[None, :]


def reference(a_norm, x, w1, b1, w2, b2):
    """Pure-JAX reference mirroring GCNN.forward (DGL GraphConv, norm='both')."""
    hp = jax.lax.Precision.HIGHEST
    h = jnp.dot(a_norm, jnp.dot(x, w1, precision=hp), precision=hp) + b1
    h = jnp.maximum(h, 0.0)
    return jnp.dot(a_norm, jnp.dot(h, w2, precision=hp), precision=hp) + b2


if __name__ == "__main__":
    N, IN_DIM, HID_DIM, OUT_DIM = 16, 32, 64, 16

    # Deterministic small undirected graph: ring + a few chords (no self loops;
    # they are added by normalized_adjacency, matching dgl.add_self_loop).
    edges = []
    for i in range(N):
        edges.append((i, (i + 1) % N))
        edges.append(((i + 1) % N, i))
        edges.append((i, (i + 5) % N))
        edges.append(((i + 5) % N, i))

    a_norm = normalized_adjacency(N, edges)

    key = jax.random.PRNGKey(0)
    k_x, k_w1, k_b1, k_w2, k_b2 = jax.random.split(key, 5)
    x = jax.random.normal(k_x, (N, IN_DIM), jnp.float32)
    w1 = jax.random.normal(k_w1, (IN_DIM, HID_DIM), jnp.float32) / (IN_DIM ** 0.5)
    b1 = jax.random.normal(k_b1, (1, HID_DIM), jnp.float32) * 0.02
    w2 = jax.random.normal(k_w2, (HID_DIM, OUT_DIM), jnp.float32) / (HID_DIM ** 0.5)
    b2 = jax.random.normal(k_b2, (1, OUT_DIM), jnp.float32) * 0.02

    out = jax.block_until_ready(gcnn_forward(a_norm, x, w1, b1, w2, b2))
    ref = reference(a_norm, x, w1, b1, w2, b2)

    assert out.shape == (N, OUT_DIM)
    if not bool(jnp.allclose(out, ref, atol=1e-2, rtol=1e-2)):
        raise AssertionError(
            "kernel/reference mismatch, max abs err = "
            f"{float(jnp.max(jnp.abs(out - ref)))}")
    print("KERNEL_OK")
</pallas_src>

<mosaic_0001>
module attributes {stable_mosaic.version = 11 : i64} {
  func.func @gcn_kernel(%arg0: i32, %arg1: memref<16x16xf32, #tpu.memory_space<vmem>>, %arg2: memref<16x32xf32, #tpu.memory_space<vmem>>, %arg3: memref<32x64xf32, #tpu.memory_space<vmem>>, %arg4: memref<1x64xf32, #tpu.memory_space<vmem>>, %arg5: memref<64x16xf32, #tpu.memory_space<vmem>>, %arg6: memref<1x16xf32, #tpu.memory_space<vmem>>, %arg7: memref<16x16xf32, #tpu.memory_space<vmem>>) attributes {dimension_semantics = [#tpu.dimension_semantics<arbitrary>], iteration_bounds = array<i64: 1>, scalar_prefetch = 0 : i64, scratch_operands = 0 : i64, tpu.core_type = #tpu.core_type<tc>, window_params = [{pipeline_mode = #tpu.pipeline_mode<synchronous>, transform_indices = @transform_0, window_bounds = array<i64: 16, 16>}, {pipeline_mode = #tpu.pipeline_mode<synchronous>, transform_indices = @transform_1, window_bounds = array<i64: 16, 32>}, {pipeline_mode = #tpu.pipeline_mode<synchronous>, transform_indices = @transform_2, window_bounds = array<i64: 32, 64>}, {pipeline_mode = #tpu.pipeline_mode<synchronous>, transform_indices = @transform_3, window_bounds = array<i64: 1, 64>}, {pipeline_mode = #tpu.pipeline_mode<synchronous>, transform_indices = @transform_4, window_bounds = array<i64: 64, 16>}, {pipeline_mode = #tpu.pipeline_mode<synchronous>, transform_indices = @transform_5, window_bounds = array<i64: 1, 16>}, {pipeline_mode = #tpu.pipeline_mode<synchronous>, transform_indices = @transform_6, window_bounds = array<i64: 16, 16>}]} {
    %c0 = arith.constant 0 : index
    %c0_0 = arith.constant 0 : index
    %0 = vector.load %arg1[%c0, %c0_0] : memref<16x16xf32, #tpu.memory_space<vmem>>, vector<16x16xf32>
    %c0_1 = arith.constant 0 : index
    %c0_2 = arith.constant 0 : index
    %1 = vector.load %arg2[%c0_1, %c0_2] : memref<16x32xf32, #tpu.memory_space<vmem>>, vector<16x32xf32>
    %cst = arith.constant dense<0.000000e+00> : vector<16x32xf32>
    %2 = tpu.matmul %0, %1, %cst {dimension_numbers = #tpu.dot_dimension_numbers<[1], [0], [0], [1], [0, 0, 1, 1], [], []>} : vector<16x16xf32>, vector<16x32xf32>, vector<16x32xf32> -> vector<16x32xf32>
    %c0_3 = arith.constant 0 : index
    %c0_4 = arith.constant 0 : index
    %3 = vector.load %arg3[%c0_3, %c0_4] : memref<32x64xf32, #tpu.memory_space<vmem>>, vector<32x64xf32>
    %cst_5 = arith.constant dense<0.000000e+00> : vector<16x64xf32>
    %4 = tpu.matmul %2, %3, %cst_5 {dimension_numbers = #tpu.dot_dimension_numbers<[1], [0], [0], [1], [0, 0, 1, 1], [], []>} : vector<16x32xf32>, vector<32x64xf32>, vector<16x64xf32> -> vector<16x64xf32>
    %c0_6 = arith.constant 0 : index
    %c0_7 = arith.constant 0 : index
    %5 = vector.load %arg4[%c0_6, %c0_7] : memref<1x64xf32, #tpu.memory_space<vmem>>, vector<1x64xf32>
    %6 = vector.broadcast %5 : vector<1x64xf32> to vector<16x64xf32>
    %7 = arith.addf %4, %6 : vector<16x64xf32>
    %cst_8 = arith.constant 0.000000e+00 : f32
    %8 = vector.broadcast %cst_8 : f32 to vector<16x64xf32>
    %9 = arith.maximumf %7, %8 : vector<16x64xf32>
    %c0_9 = arith.constant 0 : index
    %c0_10 = arith.constant 0 : index
    %10 = vector.load %arg5[%c0_9, %c0_10] : memref<64x16xf32, #tpu.memory_space<vmem>>, vector<64x16xf32>
    %cst_11 = arith.constant dense<0.000000e+00> : vector<16x16xf32>
    %11 = tpu.matmul %9, %10, %cst_11 {dimension_numbers = #tpu.dot_dimension_numbers<[1], [0], [0], [1], [0, 0, 1, 1], [], []>} : vector<16x64xf32>, vector<64x16xf32>, vector<16x16xf32> -> vector<16x16xf32>
    %cst_12 = arith.constant dense<0.000000e+00> : vector<16x16xf32>
    %12 = tpu.matmul %0, %11, %cst_12 {dimension_numbers = #tpu.dot_dimension_numbers<[1], [0], [0], [1], [0, 0, 1, 1], [], []>} : vector<16x16xf32>, vector<16x16xf32>, vector<16x16xf32> -> vector<16x16xf32>
    %c0_13 = arith.constant 0 : index
    %c0_14 = arith.constant 0 : index
    %13 = vector.load %arg6[%c0_13, %c0_14] : memref<1x16xf32, #tpu.memory_space<vmem>>, vector<1x16xf32>
    %14 = vector.broadcast %13 : vector<1x16xf32> to vector<16x16xf32>
    %15 = arith.addf %12, %14 : vector<16x16xf32>
    %c0_15 = arith.constant 0 : index
    %c0_16 = arith.constant 0 : index
    %16 = vector.load %arg7[%c0_15, %c0_16] : memref<16x16xf32, #tpu.memory_space<vmem>>, vector<16x16xf32>
    tpu.vector_store %arg7[%c0_15, %c0_16], %15 {strides = array<i32>} : memref<16x16xf32, #tpu.memory_space<vmem>>, vector<16x16xf32>,
    return
  }
  func.func @transform_0(%arg0: i32) -> (i32, i32) {
    %c0_i32 = arith.constant 0 : i32
    %c0_i32_0 = arith.constant 0 : i32
    %c0_i32_1 = arith.constant 0 : i32
    return %c0_i32, %c0_i32_0 : i32, i32
  }
  func.func @transform_1(%arg0: i32) -> (i32, i32) {
    %c0_i32 = arith.constant 0 : i32
    %c0_i32_0 = arith.constant 0 : i32
    %c0_i32_1 = arith.constant 0 : i32
    return %c0_i32, %c0_i32_0 : i32, i32
  }
  func.func @transform_2(%arg0: i32) -> (i32, i32) {
    %c0_i32 = arith.constant 0 : i32
    %c0_i32_0 = arith.constant 0 : i32
    %c0_i32_1 = arith.constant 0 : i32
    return %c0_i32, %c0_i32_0 : i32, i32
  }
  func.func @transform_3(%arg0: i32) -> (i32, i32) {
    %c0_i32 = arith.constant 0 : i32
    %c0_i32_0 = arith.constant 0 : i32
    %c0_i32_1 = arith.constant 0 : i32
    return %c0_i32, %c0_i32_0 : i32, i32
  }
  func.func @transform_4(%arg0: i32) -> (i32, i32) {
    %c0_i32 = arith.constant 0 : i32
    %c0_i32_0 = arith.constant 0 : i32
    %c0_i32_1 = arith.constant 0 : i32
    return %c0_i32, %c0_i32_0 : i32, i32
  }
  func.func @transform_5(%arg0: i32) -> (i32, i32) {
    %c0_i32 = arith.constant 0 : i32
    %c0_i32_0 = arith.constant 0 : i32
    %c0_i32_1 = arith.constant 0 : i32
    return %c0_i32, %c0_i32_0 : i32, i32
  }
  func.func @transform_6(%arg0: i32) -> (i32, i32) {
    %c0_i32 = arith.constant 0 : i32
    %c0_i32_0 = arith.constant 0 : i32
    %c0_i32_1 = arith.constant 0 : i32
    return %c0_i32, %c0_i32_0 : i32, i32
  }
}

</mosaic_0001>

<llo_original>
// kernel: tpu_custom_call.1
$region0: #{tpu_custom_call.1}
  #allocation0 [shape = 'u32[]', space=smem, size = 0x4, offset = 0x4, fixed_abs, tag = 'smem constant byte address 0x4 - core index']
  #allocation1 [shape = 'u32[144,128]{1,0:T(1,128)}', space=vmem, size = 0x12000, scoped, tag = 'internal scratch']
  %s0 = inlined_call_operand.vmem [shape: f32[16,16], index: 0, kind: input, shape index: {}]
  %s1 = inlined_call_operand.vmem [shape: f32[16,32], index: 1, kind: input, shape index: {}]
  %s2 = inlined_call_operand.vmem [shape: f32[32,64], index: 2, kind: input, shape index: {}]
  %s3 = inlined_call_operand.vmem [shape: f32[1,64], index: 3, kind: input, shape index: {}]
  %s4 = inlined_call_operand.vmem [shape: f32[64,16], index: 4, kind: input, shape index: {}]
  %s5 = inlined_call_operand.vmem [shape: f32[1,16], index: 5, kind: input, shape index: {}]
  %s6 = inlined_call_operand.hbm [shape: f32[16,16], index: 6, kind: output, shape index: {}]
  %s7 = sld [smem:[#allocation0]]
  $region34: #{tpu_custom_call.1} parent=0
    _
  %s9 = ssub.s32 1, %s7
  %s10 = scalar_select 0, %s9, %s7
  $region1: #{tpu_custom_call.1} parent=0
    #allocation2 [shape = 'u8[8192]{0}', space=vmem, size = 0x2000, scoped, tag = 'output window, operand 0, single buffered']
    #allocation3 [shape = 's32[1]{0}', space=sflag, size = 0x4, scoped, tag = 'scoped memory for tpu_custom_call.1']
    %11 = vsyncpa [#allocation3], 0
    // Predicated region
    $region2: #{tpu_custom_call.1} parent=1 // pred_check
      _
    $region3: #{tpu_custom_call.1} parent=1 // pred_check_branch
      %13 = sbr.rel (0) target = $region5
    $region4: #{tpu_custom_call.1} parent=1 // pred_region
      _
    $region5: #{tpu_custom_call.1} parent=1 // pred_fallthru
      _
    // Predicated region
    $region6: #{tpu_custom_call.1} parent=1 // pred_check
      _
    $region7: #{tpu_custom_call.1} parent=1 // pred_check_branch
      %15 = sbr.rel (0) target = $region9
    $region8: #{tpu_custom_call.1} parent=1 // pred_region
      _
    $region9: #{tpu_custom_call.1} parent=1 // pred_fallthru
      _
    // Predicated region
    $region10: #{tpu_custom_call.1} parent=1 // pred_check
      _
    $region11: #{tpu_custom_call.1} parent=1 // pred_check_branch
      %17 = sbr.rel (0) target = $region13
    $region12: #{tpu_custom_call.1} parent=1 // pred_region
      _
    $region13: #{tpu_custom_call.1} parent=1 // pred_fallthru
      _
    // Predicated region
    $region14: #{tpu_custom_call.1} parent=1 // pred_check
      _
    $region15: #{tpu_custom_call.1} parent=1 // pred_check_branch
      %19 = sbr.rel (0) target = $region17
    $region16: #{tpu_custom_call.1} parent=1 // pred_region
      _
    $region17: #{tpu_custom_call.1} parent=1 // pred_fallthru
      _
    // Predicated region
    $region18: #{tpu_custom_call.1} parent=1 // pred_check
      _
    $region19: #{tpu_custom_call.1} parent=1 // pred_check_branch
      %21 = sbr.rel (0) target = $region21
    $region20: #{tpu_custom_call.1} parent=1 // pred_region
      _
    $region21: #{tpu_custom_call.1} parent=1 // pred_fallthru
      _
    // Predicated region
    $region22: #{tpu_custom_call.1} parent=1 // pred_check
      _
    $region23: #{tpu_custom_call.1} parent=1 // pred_check_branch
      %23 = sbr.rel (0) target = $region25
    $region24: #{tpu_custom_call.1} parent=1 // pred_region
      _
    $region25: #{tpu_custom_call.1} parent=1 // pred_fallthru
      _
    %v24 = vld [vmem:[%s0] sm:$0xff]
    %v25 = vld [vmem:[%s0 + $0x8] sm:$0xff]
    %v26 = vld [vmem:[%s1] sm:$0xff]
    %v27 = vld [vmem:[%s1 + $0x8] sm:$0xff]
    %vm28 = vcmask 130048
    %v30 = vsel %vm28, %v24, 0
    %v33 = vsel %vm28, %v25, 0
    %35 = vmatprep.subr.mxu0 0.0
    %36 = vmatpush1.msra.mxu0 0.0
    %37 = vmatprep.subr.mxu0 0.0
    %38 = vmatpush1.msra.mxu0 0.0
    %39 = vmatprep.subr.mxu0 0.0
    %40 = vmatpush1.msra.mxu0 0.0
    %41 = vmatprep.subr.mxu0 0.0
    %42 = vmatpush1.msra.mxu0 0.0
    %43 = vmatprep.subr.mxu0 0.0
    %44 = vmatpush1.msra.mxu0 0.0
    %45 = vmatprep.subr.mxu0 0.0
    %46 = vmatpush1.msra.mxu0 0.0
    %47 = vmatprep.subr.mxu0 0.0
    %48 = vmatpush1.msra.mxu0 0.0
    %49 = vmatprep.subr.mxu0 0.0
    %50 = vmatpush1.msra.mxu0 0.0
    %51 = vmatprep.subr.mxu0 0.0
    %52 = vmatpush1.msra.mxu0 0.0
    %53 = vmatprep.subr.mxu0 0.0
    %54 = vmatpush1.msra.mxu0 0.0
    %55 = vmatprep.subr.mxu0 0.0
    %56 = vmatpush1.msra.mxu0 0.0
    %57 = vmatprep.subr.mxu0 0.0
    %58 = vmatpush1.msra.mxu0 0.0
    %59 = vmatprep.subr.mxu0 0.0
    %60 = vmatpush1.msra.mxu0 0.0
    %61 = vmatprep.subr.mxu0 0.0
    %62 = vmatpush1.msra.mxu0 0.0
    %63 = vmatprep.subr.mxu0 0.0
    %64 = vmatpush1.msra.mxu0 %v27
    %65 = vmatprep.subr.mxu0 0.0
    %66 = vmatpush1.msra.mxu0 %v26
    %67 = vmatprep.subr.mxu0 0.0
    %68 = vmatpush2.msra.mxu0 0.0
    %69 = vmatprep.subr.mxu0 0.0
    %70 = vmatpush2.msra.mxu0 0.0
    %71 = vmatprep.subr.mxu0 0.0
    %72 = vmatpush2.msra.mxu0 0.0
    %73 = vmatprep.subr.mxu0 0.0
    %74 = vmatpush2.msra.mxu0 0.0
    %75 = vmatprep.subr.mxu0 0.0
    %76 = vmatpush2.msra.mxu0 0.0
    %77 = vmatprep.subr.mxu0 0.0
    %78 = vmatpush2.msra.mxu0 0.0
    %79 = vmatprep.subr.mxu0 0.0
    %80 = vmatpush2.msra.mxu0 0.0
    %81 = vmatprep.subr.mxu0 0.0
    %82 = vmatpush2.msra.mxu0 0.0
    %83 = vmatprep.subr.mxu0 0.0
    %84 = vmatpush2.msra.mxu0 0.0
    %85 = vmatprep.subr.mxu0 0.0
    %86 = vmatpush2.msra.mxu0 0.0
    %87 = vmatprep.subr.mxu0 0.0
    %88 = vmatpush2.msra.mxu0 0.0
    %89 = vmatprep.subr.mxu0 0.0
    %90 = vmatpush2.msra.mxu0 0.0
    %91 = vmatprep.subr.mxu0 0.0
    %92 = vmatpush2.msra.mxu0 0.0
    %93 = vmatprep.subr.mxu0 0.0
    %94 = vmatpush2.msra.mxu0 0.0
    %95 = vmatprep.subr.mxu0 0.0
    %96 = vmatpush2.msra.mxu0 0.0
    %97 = vmatprep.subr.mxu0 0.0
    %98 = vmatpush2.msra.mxu0 0.0
    %99 = vmatprep.mubr.f32.mxu0 0.0
    %100 = vmatmul.mubr.f32.gmra.mxu0 %v30
    %v101 = vpop.f32.mrf.mxu0
    %v102 = vadd.f32 0.0, %v101
    %v103 = vpop.f32.mrf.mxu0
    %104 = vmatprep.mubr.f32.mxu0 0.0
    %105 = vmatmul.mubr.f32.gmra.mxu0 %v33
    %v106 = vpop.f32.mrf.mxu0
    %v107 = vadd.f32 0.0, %v106
    %v108 = vpop.f32.mrf.mxu0
    %109 = vdwg.mxu0
    %v110 = vld [vmem:[%s2] sm:$0xff]
    %v111 = vld [vmem:[%s2 + $0x8] sm:$0xff]
    %v112 = vld [vmem:[%s2 + $0x10] sm:$0xff]
    %v113 = vld [vmem:[%s2 + $0x18] sm:$0xff]
    %v114 = vld [vmem:[%s3] sm:$0x1]
    %v116 = vlaneseq
    %v117 = vshrl.u32 %v116, 7
    %v118 = vsub.s32 0, %v117
    %v119 = vrot.slane %v114, %v118
    %vm121 = vcmask 261120
    %v123 = vsel %vm121, %v102, 0
    %v126 = vsel %vm121, %v107, 0
    %128 = vmatprep.subr.mxu0 0.0
    %129 = vmatpush1.msra.mxu0 0.0
    %130 = vmatprep.subr.mxu0 0.0
    %131 = vmatpush1.msra.mxu0 0.0
    %132 = vmatprep.subr.mxu0 0.0
    %133 = vmatpush1.msra.mxu0 0.0
    %134 = vmatprep.subr.mxu0 0.0
    %135 = vmatpush1.msra.mxu0 0.0
    %136 = vmatprep.subr.mxu0 0.0
    %137 = vmatpush1.msra.mxu0 0.0
    %138 = vmatprep.subr.mxu0 0.0
    %139 = vmatpush1.msra.mxu0 0.0
    %140 = vmatprep.subr.mxu0 0.0
    %141 = vmatpush1.msra.mxu0 0.0
    %142 = vmatprep.subr.mxu0 0.0
    %143 = vmatpush1.msra.mxu0 0.0
    %144 = vmatprep.subr.mxu0 0.0
    %145 = vmatpush1.msra.mxu0 0.0
    %146 = vmatprep.subr.mxu0 0.0
    %147 = vmatpush1.msra.mxu0 0.0
    %148 = vmatprep.subr.mxu0 0.0
    %149 = vmatpush1.msra.mxu0 0.0
    %150 = vmatprep.subr.mxu0 0.0
    %151 = vmatpush1.msra.mxu0 0.0
    %152 = vmatprep.subr.mxu0 0.0
    %153 = vmatpush1.msra.mxu0 %v113
    %154 = vmatprep.subr.mxu0 0.0
    %155 = vmatpush1.msra.mxu0 %v112
    %156 = vmatprep.subr.mxu0 0.0
    %157 = vmatpush1.msra.mxu0 %v111
    %158 = vmatprep.subr.mxu0 0.0
    %159 = vmatpush1.msra.mxu0 %v110
    %160 = vmatprep.subr.mxu0 0.0
    %161 = vmatpush2.msra.mxu0 0.0
    %162 = vmatprep.subr.mxu0 0.0
    %163 = vmatpush2.msra.mxu0 0.0
    %164 = vmatprep.subr.mxu0 0.0
    %165 = vmatpush2.msra.mxu0 0.0
    %166 = vmatprep.subr.mxu0 0.0
    %167 = vmatpush2.msra.mxu0 0.0
    %168 = vmatprep.subr.mxu0 0.0
    %169 = vmatpush2.msra.mxu0 0.0
    %170 = vmatprep.subr.mxu0 0.0
    %171 = vmatpush2.msra.mxu0 0.0
    %172 = vmatprep.subr.mxu0 0.0
    %173 = vmatpush2.msra.mxu0 0.0
    %174 = vmatprep.subr.mxu0 0.0
    %175 = vmatpush2.msra.mxu0 0.0
    %176 = vmatprep.subr.mxu0 0.0
    %177 = vmatpush2.msra.mxu0 0.0
    %178 = vmatprep.subr.mxu0 0.0
    %179 = vmatpush2.msra.mxu0 0.0
    %180 = vmatprep.subr.mxu0 0.0
    %181 = vmatpush2.msra.mxu0 0.0
    %182 = vmatprep.subr.mxu0 0.0
    %183 = vmatpush2.msra.mxu0 0.0
    %184 = vmatprep.subr.mxu0 0.0
    %185 = vmatpush2.msra.mxu0 0.0
    %186 = vmatprep.subr.mxu0 0.0
    %187 = vmatpush2.msra.mxu0 0.0
    %188 = vmatprep.subr.mxu0 0.0
    %189 = vmatpush2.msra.mxu0 0.0
    %190 = vmatprep.subr.mxu0 0.0
    %191 = vmatpush2.msra.mxu0 0.0
    %192 = vmatprep.mubr.f32.mxu0 0.0
    %193 = vmatmul.mubr.f32.gmra.mxu0 %v123
    %v194 = vpop.f32.mrf.mxu0
    %v195 = vadd.f32 %v119, %v194
    %v196 = vpop.f32.mrf.mxu0
    %197 = vmatprep.mubr.f32.mxu0 0.0
    %198 = vmatmul.mubr.f32.gmra.mxu0 %v126
    %v199 = vpop.f32.mrf.mxu0
    %v200 = vadd.f32 %v119, %v199
    %v201 = vpop.f32.mrf.mxu0
    %202 = vdwg.mxu0
    %v203 = vmax.f32 %v195, 0.0
    %v204 = vmax.f32 %v200, 0.0
    %v205 = vld [vmem:[%s4] sm:$0xff]
    %v206 = vld [vmem:[%s4 + $0x8] sm:$0xff]
    %v207 = vld [vmem:[%s4 + $0x10] sm:$0xff]
    %v208 = vld [vmem:[%s4 + $0x18] sm:$0xff]
    %v209 = vld [vmem:[%s4 + $0x20] sm:$0xff]
    %v210 = vld [vmem:[%s4 + $0x28] sm:$0xff]
    %v211 = vld [vmem:[%s4 + $0x30] sm:$0xff]
    %v212 = vld [vmem:[%s4 + $0x38] sm:$0xff]
    %vm213 = vcmask 523264
    %v215 = vsel %vm213, %v203, 0
    %v218 = vsel %vm213, %v204, 0
    %220 = vmatprep.subr.mxu0 0.0
    %221 = vmatpush1.msra.mxu0 0.0
    %222 = vmatprep.subr.mxu0 0.0
    %223 = vmatpush1.msra.mxu0 0.0
    %224 = vmatprep.subr.mxu0 0.0
    %225 = vmatpush1.msra.mxu0 0.0
    %226 = vmatprep.subr.mxu0 0.0
    %227 = vmatpush1.msra.mxu0 0.0
    %228 = vmatprep.subr.mxu0 0.0
    %229 = vmatpush1.msra.mxu0 0.0
    %230 = vmatprep.subr.mxu0 0.0
    %231 = vmatpush1.msra.mxu0 0.0
    %232 = vmatprep.subr.mxu0 0.0
    %233 = vmatpush1.msra.mxu0 0.0
    %234 = vmatprep.subr.mxu0 0.0
    %235 = vmatpush1.msra.mxu0 0.0
    %236 = vmatprep.subr.mxu0 0.0
    %237 = vmatpush1.msra.mxu0 %v212
    %238 = vmatprep.subr.mxu0 0.0
    %239 = vmatpush1.msra.mxu0 %v211
    %240 = vmatprep.subr.mxu0 0.0
    %241 = vmatpush1.msra.mxu0 %v210
    %242 = vmatprep.subr.mxu0 0.0
    %243 = vmatpush1.msra.mxu0 %v209
    %244 = vmatprep.subr.mxu0 0.0
    %245 = vmatpush1.msra.mxu0 %v208
    %246 = vmatprep.subr.mxu0 0.0
    %247 = vmatpush1.msra.mxu0 %v207
    %248 = vmatprep.subr.mxu0 0.0
    %249 = vmatpush1.msra.mxu0 %v206
    %250 = vmatprep.subr.mxu0 0.0
    %251 = vmatpush1.msra.mxu0 %v205
    %252 = vmatprep.subr.mxu0 0.0
    %253 = vmatpush2.msra.mxu0 0.0
    %254 = vmatprep.subr.mxu0 0.0
    %255 = vmatpush2.msra.mxu0 0.0
    %256 = vmatprep.subr.mxu0 0.0
    %257 = vmatpush2.msra.mxu0 0.0
    %258 = vmatprep.subr.mxu0 0.0
    %259 = vmatpush2.msra.mxu0 0.0
    %260 = vmatprep.subr.mxu0 0.0
    %261 = vmatpush2.msra.mxu0 0.0
    %262 = vmatprep.subr.mxu0 0.0
    %263 = vmatpush2.msra.mxu0 0.0
    %264 = vmatprep.subr.mxu0 0.0
    %265 = vmatpush2.msra.mxu0 0.0
    %266 = vmatprep.subr.mxu0 0.0
    %267 = vmatpush2.msra.mxu0 0.0
    %268 = vmatprep.subr.mxu0 0.0
    %269 = vmatpush2.msra.mxu0 0.0
    %270 = vmatprep.subr.mxu0 0.0
    %271 = vmatpush2.msra.mxu0 0.0
    %272 = vmatprep.subr.mxu0 0.0
    %273 = vmatpush2.msra.mxu0 0.0
    %274 = vmatprep.subr.mxu0 0.0
    %275 = vmatpush2.msra.mxu0 0.0
    %276 = vmatprep.subr.mxu0 0.0
    %277 = vmatpush2.msra.mxu0 0.0
    %278 = vmatprep.subr.mxu0 0.0
    %279 = vmatpush2.msra.mxu0 0.0
    %280 = vmatprep.subr.mxu0 0.0
    %281 = vmatpush2.msra.mxu0 0.0
    %282 = vmatprep.subr.mxu0 0.0
    %283 = vmatpush2.msra.mxu0 0.0
    %284 = vmatprep.mubr.f32.mxu0 0.0
    %285 = vmatmul.mubr.f32.gmra.mxu0 %v215
    %v286 = vpop.f32.mrf.mxu0
    %v287 = vadd.f32 0.0, %v286
    %v288 = vpop.f32.mrf.mxu0
    %289 = vmatprep.mubr.f32.mxu0 0.0
    %290 = vmatmul.mubr.f32.gmra.mxu0 %v218
    %v291 = vpop.f32.mrf.mxu0
    %v292 = vadd.f32 0.0, %v291
    %v293 = vpop.f32.mrf.mxu0
    %294 = vdwg.mxu0
    %v295 = vld [vmem:[%s5] sm:$0x1]
    %v297 = vlaneseq
    %v298 = vshrl.u32 %v297, 7
    %v299 = vsub.s32 0, %v298
    %v300 = vrot.slane %v295, %v299
    %302 = vmatprep.subr.mxu0 0.0
    %303 = vmatpush1.msra.mxu0 0.0
    %304 = vmatprep.subr.mxu0 0.0
    %305 = vmatpush1.msra.mxu0 0.0
    %306 = vmatprep.subr.mxu0 0.0
    %307 = vmatpush1.msra.mxu0 0.0
    %308 = vmatprep.subr.mxu0 0.0
    %309 = vmatpush1.msra.mxu0 0.0
    %310 = vmatprep.subr.mxu0 0.0
    %311 = vmatpush1.msra.mxu0 0.0
    %312 = vmatprep.subr.mxu0 0.0
    %313 = vmatpush1.msra.mxu0 0.0
    %314 = vmatprep.subr.mxu0 0.0
    %315 = vmatpush1.msra.mxu0 0.0
    %316 = vmatprep.subr.mxu0 0.0
    %317 = vmatpush1.msra.mxu0 0.0
    %318 = vmatprep.subr.mxu0 0.0
    %319 = vmatpush1.msra.mxu0 0.0
    %320 = vmatprep.subr.mxu0 0.0
    %321 = vmatpush1.msra.mxu0 0.0
    %322 = vmatprep.subr.mxu0 0.0
    %323 = vmatpush1.msra.mxu0 0.0
    %324 = vmatprep.subr.mxu0 0.0
    %325 = vmatpush1.msra.mxu0 0.0
    %326 = vmatprep.subr.mxu0 0.0
    %327 = vmatpush1.msra.mxu0 0.0
    %328 = vmatprep.subr.mxu0 0.0
    %329 = vmatpush1.msra.mxu0 0.0
    %330 = vmatprep.subr.mxu0 0.0
    %331 = vmatpush1.msra.mxu0 %v292
    %332 = vmatprep.subr.mxu0 0.0
    %333 = vmatpush1.msra.mxu0 %v287
    %334 = vmatprep.subr.mxu0 0.0
    %335 = vmatpush2.msra.mxu0 0.0
    %336 = vmatprep.subr.mxu0 0.0
    %337 = vmatpush2.msra.mxu0 0.0
    %338 = vmatprep.subr.mxu0 0.0
    %339 = vmatpush2.msra.mxu0 0.0
    %340 = vmatprep.subr.mxu0 0.0
    %341 = vmatpush2.msra.mxu0 0.0
    %342 = vmatprep.subr.mxu0 0.0
    %343 = vmatpush2.msra.mxu0 0.0
    %344 = vmatprep.subr.mxu0 0.0
    %345 = vmatpush2.msra.mxu0 0.0
    %346 = vmatprep.subr.mxu0 0.0
    %347 = vmatpush2.msra.mxu0 0.0
    %348 = vmatprep.subr.mxu0 0.0
    %349 = vmatpush2.msra.mxu0 0.0
    %350 = vmatprep.subr.mxu0 0.0
    %351 = vmatpush2.msra.mxu0 0.0
    %352 = vmatprep.subr.mxu0 0.0
    %353 = vmatpush2.msra.mxu0 0.0
    %354 = vmatprep.subr.mxu0 0.0
    %355 = vmatpush2.msra.mxu0 0.0
    %356 = vmatprep.subr.mxu0 0.0
    %357 = vmatpush2.msra.mxu0 0.0
    %358 = vmatprep.subr.mxu0 0.0
    %359 = vmatpush2.msra.mxu0 0.0
    %360 = vmatprep.subr.mxu0 0.0
    %361 = vmatpush2.msra.mxu0 0.0
    %362 = vmatprep.subr.mxu0 0.0
    %363 = vmatpush2.msra.mxu0 0.0
    %364 = vmatprep.subr.mxu0 0.0
    %365 = vmatpush2.msra.mxu0 0.0
    %366 = vmatprep.mubr.f32.mxu0 0.0
    %367 = vmatmul.mubr.f32.gmra.mxu0 %v30
    %v368 = vpop.f32.mrf.mxu0
    %v369 = vadd.f32 %v300, %v368
    %v370 = vpop.f32.mrf.mxu0
    %371 = vmatprep.mubr.f32.mxu0 0.0
    %372 = vmatmul.mubr.f32.gmra.mxu0 %v33
    %v373 = vpop.f32.mrf.mxu0
    %v374 = vadd.f32 %v300, %v373
    %v375 = vpop.f32.mrf.mxu0
    %376 = vdwg.mxu0
    %377 = vst.msk [vmem:[#allocation2] sm:$0xff] %vm28, %v369
    %378 = vst.msk [vmem:[#allocation2 + $0x8] sm:$0xff] %vm28, %v374
    // Predicated region
    $region26: #{tpu_custom_call.1} parent=1 // pred_check
      _
    $region27: #{tpu_custom_call.1} parent=1 // pred_check_branch
      %380 = sbr.rel (0) target = $region29
    $region28: #{tpu_custom_call.1} parent=1 // pred_region
      %s382 = ssub.s32 256, 256
      %383 = vsyncadd [#allocation3], %s382
      %s384 = sshll.u32 [#allocation2], 4
      %s385 = int_to_ptr.vmem [resolvable:$true] %s384
      %390 = dma.vmem_to_hbm [thread:$0]  %s385, 256, %s6, [#allocation3], 128, 128, 8
    $region29: #{tpu_custom_call.1} parent=1 // pred_fallthru
      _
    // Predicated region
    $region30: #{tpu_custom_call.1} parent=1 // pred_check
      _
    $region31: #{tpu_custom_call.1} parent=1 // pred_check_branch
      %392 = sbr.rel (0) target = $region33
    $region32: #{tpu_custom_call.1} parent=1 // pred_region
      %393 = dma.done [#allocation3], 256
    $region33: #{tpu_custom_call.1} parent=1 // pred_fallthru
      _
    %394 = vsyncpa [#allocation3], 1

</llo_original>
